<compile_context>
chip_gen: v6e
topology: v6e:2x2x1
jax: 0.10.0
libtpu: 0.0.40
codegen_flags: <defaults>
</compile_context>

<pallas_src>
import functools

import jax
import jax.numpy as jnp
from jax.experimental import pallas as pl
from jax.experimental.pallas import tpu as pltpu

_LANE = 128      # vreg lane width (last dim)
_SUBLANE = 8     # vreg sublane count (second-to-last dim)


def _round_up(x, m):
    return ((x + m - 1) // m) * m


@functools.lru_cache(maxsize=1)
def _vmem_capacity_bytes():
    """Per-TensorCore VMEM capacity; conservative 64 MiB (v7x) fallback."""
    try:
        return int(pltpu.get_tpu_info().vmem_capacity_bytes)
    except Exception:
        return 64 * 1024 * 1024


def _vmem_budget_and_limit():
    cap = _vmem_capacity_bytes()
    # ~70% working-set budget / ~85% scoped limit:
    #   v7x  (64 MiB):  ~45 / ~54 MiB      v5e/v6e (128 MiB): ~90 / ~109 MiB
    return int(cap * 0.70), int(cap * 0.85)


def _pad_dim(d):
    """Lane-dense feature padding; round to 256 (full 256x256 MXU passes on
    v6e/v7x) when the extra zero padding over the 128-multiple is <10%."""
    p128 = _round_up(d, _LANE)
    p256 = _round_up(d, 2 * _LANE)
    return p256 if (p256 - p128) * 10 <= p128 else p128


# ---------------------------------------------------------------------------
# Kernels
# ---------------------------------------------------------------------------

def _expert_fused_kernel(x_ref, w1_ref, b1_ref, w2_ref, b2_ref, w3_ref, b3_ref,
                         o_ref):
    """Fully fused fc1-relu-fc2-relu-fc3 for one batch tile (weights resident).

    Matmul operands are bf16 (MXU-native) with f32 accumulation; bias add and
    ReLU run on the VPU in f32.  Dropout (p=0.2) is identity in eval mode.
    """
    x = x_ref[...]                                            # bf16 [bb, Din]
    h1 = jnp.dot(x, w1_ref[...], preferred_element_type=jnp.float32)
    h1 = jnp.maximum(h1 + b1_ref[...], 0.0)
    h2 = jnp.dot(h1.astype(jnp.bfloat16), w2_ref[...],
                 preferred_element_type=jnp.float32)
    h2 = jnp.maximum(h2 + b2_ref[...], 0.0)
    y = jnp.dot(h2.astype(jnp.bfloat16), w3_ref[...],
                preferred_element_type=jnp.float32)
    o_ref[...] = (y + b3_ref[...]).astype(o_ref.dtype)
    # TODO(synk): training-mode dropout (p=0.2) would need pltpu.prng_seed /
    #             pltpu.prng_random_bits keep-masks plus 1/(1-p) scaling.


def _expert_tiled_kernel(x_ref, w1_ref, b1_ref, w2_ref, b2_ref, w3_ref, b3_ref,
                         o_ref, acc_ref):
    """Hidden-dim-tiled variant: grid = (batch tiles, hidden K tiles).

    Streams w1 column-slices and w2 K-row-slices (the dominant VMEM consumers),
    accumulating fc2's output in an f32 VMEM scratch across the reduction axis;
    ReLU + fc3 run once at the last K step.  w3 stays resident.
    """
    k = pl.program_id(1)

    @pl.when(k == 0)
    def _():
        acc_ref[...] = jnp.zeros_like(acc_ref)

    # fc1 hidden-slice + relu (dropout identity in eval mode).
    h1_k = jnp.dot(x_ref[...], w1_ref[...], preferred_element_type=jnp.float32)
    h1_k = jnp.maximum(h1_k + b1_ref[...], 0.0)
    # Partial fc2: accumulate over the hidden (contraction) dimension.
    acc_ref[...] += jnp.dot(h1_k.astype(jnp.bfloat16), w2_ref[...],
                            preferred_element_type=jnp.float32)

    @pl.when(k == pl.num_programs(1) - 1)
    def _():
        h2 = jnp.maximum(acc_ref[...] + b2_ref[...], 0.0)
        y = jnp.dot(h2.astype(jnp.bfloat16), w3_ref[...],
                    preferred_element_type=jnp.float32)
        o_ref[...] = (y + b3_ref[...]).astype(o_ref.dtype)
    # TODO(synk): for very large output_dim, also stream w3 row-slices (second
    #             reduction phase) instead of keeping it resident.


# ---------------------------------------------------------------------------
# VMEM working-set estimates (account for Pallas' 2x buffering of all operands)
# ---------------------------------------------------------------------------

def _est_fused_vmem(bb, din_p, h_p, dout_p, out_itemsize):
    weights = 2 * (2 * (din_p * h_p + h_p * h_p + h_p * dout_p)   # bf16 weights x2 bufs
                   + 4 * (2 * h_p + dout_p))                      # f32 biases  x2 bufs
    io = 2 * bb * din_p * 2 + 2 * bb * dout_p * out_itemsize      # x / out tiles x2 bufs
    acts = bb * h_p * 12 + bb * dout_p * 4                        # h1/h2 f32+bf16, y f32
    return weights + io + acts


def _est_tiled_vmem(bb, bh, din_p, h_p, dout_p, out_itemsize):
    weights = 2 * (2 * (din_p * bh + bh * h_p + h_p * dout_p)     # streamed slices + w3
                   + 4 * (bh + h_p + dout_p))
    io = 2 * bb * din_p * 2 + 2 * bb * dout_p * out_itemsize
    acc = bb * h_p * 4                                            # f32 accumulator scratch
    acts = bb * bh * 6 + bb * h_p * 6 + bb * dout_p * 4
    return weights + io + acc + acts


# ---------------------------------------------------------------------------
# Tile pickers
# ---------------------------------------------------------------------------

_BLOCK_B_CANDIDATES = (1024, 768, 512, 384, 256, 128, 64, 32, 16, 8)


def _pick_block_b(B, fits):
    """Largest batch tile that (a) fits the VMEM budget, (b) keeps batch-padding
    waste small (<~25%), and (c) when possible yields >=2 grid steps so v7x's
    two TensorCores both get work."""
    feasible = []
    for bb in _BLOCK_B_CANDIDATES:
        if not fits(bb):
            continue
        b_pad = _round_up(max(B, 1), bb)
        feasible.append((bb, b_pad - B, b_pad // bb))
    if not feasible:
        return _SUBLANE
    ok = [f for f in feasible if f[1] <= max(B // 4, _SUBLANE)]
    if not ok:
        ok = feasible
    multi = [f for f in ok if f[2] >= 2 and f[0] >= 64]
    pool = multi if multi else ok
    return max(pool, key=lambda f: f[0])[0]


def _pick_block_h(h_p, fits):
    for bh in (2048, 1024, 512, 256, 128):
        if bh <= h_p and h_p % bh == 0 and fits(bh):
            return bh
    return min(_LANE, h_p)


# ---------------------------------------------------------------------------
# Parameter prep (one-time; hoisted out of the forward path)
# ---------------------------------------------------------------------------

def prepare_expert_params(w1, b1, w2, b2, w3, b3):
    """Pad feature dims to lane-dense multiples and cast weights to bf16
    (MXU-native), biases to f32.  Call once; reuse the result every forward.

    wN: [in_features, out_features]  (pre-transposed vs. nn.Linear's [out, in])
    bN: [out_features]
    """
    input_dim, hidden_dim = w1.shape
    output_dim = w3.shape[1]
    din_p, h_p, dout_p = _pad_dim(input_dim), _pad_dim(hidden_dim), _pad_dim(output_dim)

    def pad2(a, r, c, dtype):
        a = jnp.asarray(a, dtype)
        return jnp.pad(a, ((0, r - a.shape[0]), (0, c - a.shape[1])))

    # Zero padding is exact: padded input features / hidden units contribute 0.
    return {
        "w1": pad2(w1, din_p, h_p, jnp.bfloat16),
        "b1": pad2(jnp.reshape(b1, (1, -1)), 1, h_p, jnp.float32),
        "w2": pad2(w2, h_p, h_p, jnp.bfloat16),
        "b2": pad2(jnp.reshape(b2, (1, -1)), 1, h_p, jnp.float32),
        "w3": pad2(w3, h_p, dout_p, jnp.bfloat16),
        "b3": pad2(jnp.reshape(b3, (1, -1)), 1, dout_p, jnp.float32),
        "input_dim": int(input_dim),
        "hidden_dim": int(hidden_dim),
        "output_dim": int(output_dim),
    }


# ---------------------------------------------------------------------------
# Forward
# ---------------------------------------------------------------------------

@functools.partial(
    jax.jit,
    static_argnames=("input_dim", "output_dim", "force_tiled", "out_dtype"))
def _expert_forward_impl(x, w1, b1, w2, b2, w3, b3, *, input_dim, output_dim,
                         force_tiled, out_dtype):
    B = x.shape[0]
    assert x.shape[1] == input_dim, (x.shape, input_dim)
    din_p, h_p = w1.shape
    dout_p = w3.shape[1]
    out_dtype = jnp.dtype(out_dtype)
    out_itemsize = out_dtype.itemsize

    budget, vmem_limit = _vmem_budget_and_limit()

    # Fused (resident-weight) path only if it fits with a reasonable batch tile;
    # otherwise stream hidden-dim slices.
    probe_bb = min(64, _round_up(B, _SUBLANE))
    use_tiled = force_tiled or (
        _est_fused_vmem(probe_bb, din_p, h_p, dout_p, out_itemsize) > budget)

    weight_bytes = (2 * (din_p * h_p + h_p * h_p + h_p * dout_p)
                    + 4 * (2 * h_p + dout_p))

    if not use_tiled:
        block_b = _pick_block_b(
            B, lambda bb: _est_fused_vmem(bb, din_p, h_p, dout_p, out_itemsize) <= budget)
        b_pad = _round_up(B, block_b)
        grid = (b_pad // block_b,)
        kernel = _expert_fused_kernel
        in_specs = [
            # x: tiled along batch.
            pl.BlockSpec((block_b, din_p), lambda i: (i, 0)),
            # weights / biases: constant index_map -> fetched once, resident.
            pl.BlockSpec((din_p, h_p), lambda i: (0, 0)),
            pl.BlockSpec((1, h_p), lambda i: (0, 0)),
            pl.BlockSpec((h_p, h_p), lambda i: (0, 0)),
            pl.BlockSpec((1, h_p), lambda i: (0, 0)),
            pl.BlockSpec((h_p, dout_p), lambda i: (0, 0)),
            pl.BlockSpec((1, dout_p), lambda i: (0, 0)),
        ]
        out_spec = pl.BlockSpec((block_b, dout_p), lambda i: (i, 0))
        scratch_shapes = []
        dim_sem = ("parallel",)
        weights_read = weight_bytes
    else:
        block_b = _pick_block_b(
            B, lambda bb: _est_tiled_vmem(bb, _LANE, din_p, h_p, dout_p,
                                          out_itemsize) <= budget)
        block_h = _pick_block_h(
            h_p, lambda bh: _est_tiled_vmem(block_b, bh, din_p, h_p, dout_p,
                                            out_itemsize) <= budget)
        b_pad = _round_up(B, block_b)
        grid = (b_pad // block_b, h_p // block_h)
        kernel = _expert_tiled_kernel
        in_specs = [
            pl.BlockSpec((block_b, din_p), lambda i, k: (i, 0)),
            pl.BlockSpec((din_p, block_h), lambda i, k: (0, k)),   # w1 col-slice
            pl.BlockSpec((1, block_h), lambda i, k: (0, k)),       # b1 slice
            pl.BlockSpec((block_h, h_p), lambda i, k: (k, 0)),     # w2 K-row-slice
            pl.BlockSpec((1, h_p), lambda i, k: (0, 0)),           # b2 resident
            pl.BlockSpec((h_p, dout_p), lambda i, k: (0, 0)),      # w3 resident
            pl.BlockSpec((1, dout_p), lambda i, k: (0, 0)),        # b3 resident
        ]
        out_spec = pl.BlockSpec((block_b, dout_p), lambda i, k: (i, 0))
        scratch_shapes = [pltpu.VMEM((block_b, h_p), jnp.float32)]
        dim_sem = ("parallel", "arbitrary")
        # streamed w1/w2 are re-read once per batch tile
        weights_read = ((b_pad // block_b) * 2 * (din_p * h_p + h_p * h_p)
                        + 2 * h_p * dout_p + 4 * (2 * h_p + dout_p))

    x_p = jnp.pad(x, ((0, b_pad - B), (0, din_p - input_dim))).astype(jnp.bfloat16)

    flops = 2 * b_pad * (din_p * h_p + h_p * h_p + h_p * dout_p)
    bytes_accessed = (b_pad * din_p * 2 + b_pad * dout_p * out_itemsize
                      + weights_read)
    cost = pl.CostEstimate(flops=int(flops), transcendentals=0,
                           bytes_accessed=int(bytes_accessed))

    out = pl.pallas_call(
        kernel,
        out_shape=jax.ShapeDtypeStruct((b_pad, dout_p), out_dtype),
        grid_spec=pltpu.PrefetchScalarGridSpec(
            num_scalar_prefetch=0,
            grid=grid,
            in_specs=in_specs,
            out_specs=out_spec,
            scratch_shapes=scratch_shapes,
        ),
        compiler_params=pltpu.CompilerParams(
            dimension_semantics=dim_sem,
            vmem_limit_bytes=vmem_limit,
        ),
        cost_estimate=cost,
    )(x_p, w1, b1, w2, b2, w3, b3)

    return out[:B, :output_dim]


def expert_forward(x, params, *, force_tiled=False, out_dtype=None):
    """Expert MLP forward: y = fc3(relu(fc2(relu(fc1(x))))) (eval-mode dropout).

    `params` comes from prepare_expert_params (padded bf16 weights, f32 biases).
    Set out_dtype=jnp.bfloat16 to halve the output writeback when acceptable.
    """
    out_dtype = jnp.dtype(out_dtype if out_dtype is not None else x.dtype)
    return _expert_forward_impl(
        x, params["w1"], params["b1"], params["w2"], params["b2"],
        params["w3"], params["b3"],
        input_dim=params["input_dim"], output_dim=params["output_dim"],
        force_tiled=force_tiled, out_dtype=out_dtype)


# ---------------------------------------------------------------------------
# Demo / self-check
# ---------------------------------------------------------------------------

if __name__ == "__main__":
    key = jax.random.PRNGKey(0)

    def init_linear(k, fan_in, fan_out):
        """nn.Linear-style U(-1/sqrt(fan_in), 1/sqrt(fan_in)); weight returned
        pre-transposed as [fan_in, fan_out]."""
        kw, kb = jax.random.split(k)
        bound = 1.0 / (fan_in ** 0.5)
        w = jax.random.uniform(kw, (fan_in, fan_out), jnp.float32, -bound, bound)
        b = jax.random.uniform(kb, (fan_out,), jnp.float32, -bound, bound)
        return w, b

    def reference(x, w1, b1, w2, b2, w3, b3):
        # Eval-mode dropout = identity; emulate bf16 MXU operands w/ f32 accum.
        def q(a):
            return a.astype(jnp.bfloat16).astype(jnp.float32)
        h1 = jnp.maximum(q(x) @ q(w1) + b1[None, :], 0.0)
        h2 = jnp.maximum(q(h1) @ q(w2) + b2[None, :], 0.0)
        return q(h2) @ q(w3) + b3[None, :]

    # --- Test 1: small Expert, fused (resident-weight) path -----------------
    batch, input_dim, hidden_dim, output_dim = 8, 16, 32, 8
    kx, k1, k2, k3, key = jax.random.split(key, 5)
    x = jax.random.normal(kx, (batch, input_dim), jnp.float32)
    w1, b1 = init_linear(k1, input_dim, hidden_dim)
    w2, b2 = init_linear(k2, hidden_dim, hidden_dim)
    w3, b3 = init_linear(k3, hidden_dim, output_dim)

    params = prepare_expert_params(w1, b1, w2, b2, w3, b3)
    out = jax.block_until_ready(expert_forward(x, params))
    assert out.shape == (batch, output_dim)
    ref = reference(x, w1, b1, w2, b2, w3, b3)
    assert jnp.allclose(out, ref, atol=2e-2, rtol=2e-2), (
        float(jnp.max(jnp.abs(out - ref))))

    # --- Test 2: exercise the hidden-dim-tiled (streaming-weight) path ------
    batch2, input_dim2, hidden_dim2, output_dim2 = 16, 64, 320, 48
    kx, k1, k2, k3, key = jax.random.split(key, 5)
    x2 = jax.random.normal(kx, (batch2, input_dim2), jnp.float32)
    w1, b1 = init_linear(k1, input_dim2, hidden_dim2)
    w2, b2 = init_linear(k2, hidden_dim2, hidden_dim2)
    w3, b3 = init_linear(k3, hidden_dim2, output_dim2)

    params2 = prepare_expert_params(w1, b1, w2, b2, w3, b3)
    out2 = jax.block_until_ready(expert_forward(x2, params2, force_tiled=True))
    assert out2.shape == (batch2, output_dim2)
    ref2 = reference(x2, w1, b1, w2, b2, w3, b3)
    assert jnp.allclose(out2, ref2, atol=2e-2, rtol=2e-2), (
        float(jnp.max(jnp.abs(out2 - ref2))))

    print("KERNEL_OK")
</pallas_src>

<mosaic_0001>
module attributes {stable_mosaic.version = 11 : i64} {
  func.func @_expert_fused_kernel(%arg0: i32, %arg1: memref<16x128xbf16, #tpu.memory_space<vmem>>, %arg2: memref<128x128xbf16, #tpu.memory_space<vmem>>, %arg3: memref<1x128xf32, #tpu.memory_space<vmem>>, %arg4: memref<128x128xbf16, #tpu.memory_space<vmem>>, %arg5: memref<1x128xf32, #tpu.memory_space<vmem>>, %arg6: memref<128x128xbf16, #tpu.memory_space<vmem>>, %arg7: memref<1x128xf32, #tpu.memory_space<vmem>>, %arg8: memref<16x128xf32, #tpu.memory_space<vmem>>) attributes {dimension_semantics = [#tpu.dimension_semantics<parallel>], iteration_bounds = array<i64: 1>, scalar_prefetch = 0 : i64, scratch_operands = 0 : i64, tpu.core_type = #tpu.core_type<tc>, window_params = [{transform_indices = @transform_0, window_bounds = array<i64: 16, 128>}, {pipeline_mode = #tpu.pipeline_mode<synchronous>, transform_indices = @transform_1, window_bounds = array<i64: 128, 128>}, {pipeline_mode = #tpu.pipeline_mode<synchronous>, transform_indices = @transform_2, window_bounds = array<i64: 1, 128>}, {pipeline_mode = #tpu.pipeline_mode<synchronous>, transform_indices = @transform_3, window_bounds = array<i64: 128, 128>}, {pipeline_mode = #tpu.pipeline_mode<synchronous>, transform_indices = @transform_4, window_bounds = array<i64: 1, 128>}, {pipeline_mode = #tpu.pipeline_mode<synchronous>, transform_indices = @transform_5, window_bounds = array<i64: 128, 128>}, {pipeline_mode = #tpu.pipeline_mode<synchronous>, transform_indices = @transform_6, window_bounds = array<i64: 1, 128>}, {transform_indices = @transform_7, window_bounds = array<i64: 16, 128>}]} {
    %c0 = arith.constant 0 : index
    %c0_0 = arith.constant 0 : index
    %0 = vector.load %arg1[%c0, %c0_0] : memref<16x128xbf16, #tpu.memory_space<vmem>>, vector<16x128xbf16>
    %c0_1 = arith.constant 0 : index
    %c0_2 = arith.constant 0 : index
    %1 = vector.load %arg2[%c0_1, %c0_2] : memref<128x128xbf16, #tpu.memory_space<vmem>>, vector<128x128xbf16>
    %cst = arith.constant dense<0.000000e+00> : vector<16x128xf32>
    %2 = tpu.matmul %0, %1, %cst {dimension_numbers = #tpu.dot_dimension_numbers<[1], [0], [0], [1], [0, 0, 1, 1], [], []>} : vector<16x128xbf16>, vector<128x128xbf16>, vector<16x128xf32> -> vector<16x128xf32>
    %c0_3 = arith.constant 0 : index
    %c0_4 = arith.constant 0 : index
    %3 = vector.load %arg3[%c0_3, %c0_4] : memref<1x128xf32, #tpu.memory_space<vmem>>, vector<1x128xf32>
    %4 = vector.broadcast %3 : vector<1x128xf32> to vector<16x128xf32>
    %5 = arith.addf %2, %4 : vector<16x128xf32>
    %cst_5 = arith.constant 0.000000e+00 : f32
    %6 = vector.broadcast %cst_5 : f32 to vector<16x128xf32>
    %7 = arith.maximumf %5, %6 : vector<16x128xf32>
    %8 = arith.truncf %7 : vector<16x128xf32> to vector<16x128xbf16>
    %c0_6 = arith.constant 0 : index
    %c0_7 = arith.constant 0 : index
    %9 = vector.load %arg4[%c0_6, %c0_7] : memref<128x128xbf16, #tpu.memory_space<vmem>>, vector<128x128xbf16>
    %cst_8 = arith.constant dense<0.000000e+00> : vector<16x128xf32>
    %10 = tpu.matmul %8, %9, %cst_8 {dimension_numbers = #tpu.dot_dimension_numbers<[1], [0], [0], [1], [0, 0, 1, 1], [], []>} : vector<16x128xbf16>, vector<128x128xbf16>, vector<16x128xf32> -> vector<16x128xf32>
    %c0_9 = arith.constant 0 : index
    %c0_10 = arith.constant 0 : index
    %11 = vector.load %arg5[%c0_9, %c0_10] : memref<1x128xf32, #tpu.memory_space<vmem>>, vector<1x128xf32>
    %12 = vector.broadcast %11 : vector<1x128xf32> to vector<16x128xf32>
    %13 = arith.addf %10, %12 : vector<16x128xf32>
    %cst_11 = arith.constant 0.000000e+00 : f32
    %14 = vector.broadcast %cst_11 : f32 to vector<16x128xf32>
    %15 = arith.maximumf %13, %14 : vector<16x128xf32>
    %16 = arith.truncf %15 : vector<16x128xf32> to vector<16x128xbf16>
    %c0_12 = arith.constant 0 : index
    %c0_13 = arith.constant 0 : index
    %17 = vector.load %arg6[%c0_12, %c0_13] : memref<128x128xbf16, #tpu.memory_space<vmem>>, vector<128x128xbf16>
    %cst_14 = arith.constant dense<0.000000e+00> : vector<16x128xf32>
    %18 = tpu.matmul %16, %17, %cst_14 {dimension_numbers = #tpu.dot_dimension_numbers<[1], [0], [0], [1], [0, 0, 1, 1], [], []>} : vector<16x128xbf16>, vector<128x128xbf16>, vector<16x128xf32> -> vector<16x128xf32>
    %c0_15 = arith.constant 0 : index
    %c0_16 = arith.constant 0 : index
    %19 = vector.load %arg7[%c0_15, %c0_16] : memref<1x128xf32, #tpu.memory_space<vmem>>, vector<1x128xf32>
    %20 = vector.broadcast %19 : vector<1x128xf32> to vector<16x128xf32>
    %21 = arith.addf %18, %20 : vector<16x128xf32>
    %c0_17 = arith.constant 0 : index
    %c0_18 = arith.constant 0 : index
    %22 = vector.load %arg8[%c0_17, %c0_18] : memref<16x128xf32, #tpu.memory_space<vmem>>, vector<16x128xf32>
    tpu.vector_store %arg8[%c0_17, %c0_18], %21 {strides = array<i32>} : memref<16x128xf32, #tpu.memory_space<vmem>>, vector<16x128xf32>,
    return
  }
  func.func @transform_0(%arg0: i32) -> (i32, i32) {
    %c0_i32 = arith.constant 0 : i32
    %c0_i32_0 = arith.constant 0 : i32
    return %arg0, %c0_i32 : i32, i32
  }
  func.func @transform_1(%arg0: i32) -> (i32, i32) {
    %c0_i32 = arith.constant 0 : i32
    %c0_i32_0 = arith.constant 0 : i32
    %c0_i32_1 = arith.constant 0 : i32
    return %c0_i32, %c0_i32_0 : i32, i32
  }
  func.func @transform_2(%arg0: i32) -> (i32, i32) {
    %c0_i32 = arith.constant 0 : i32
    %c0_i32_0 = arith.constant 0 : i32
    %c0_i32_1 = arith.constant 0 : i32
    return %c0_i32, %c0_i32_0 : i32, i32
  }
  func.func @transform_3(%arg0: i32) -> (i32, i32) {
    %c0_i32 = arith.constant 0 : i32
    %c0_i32_0 = arith.constant 0 : i32
    %c0_i32_1 = arith.constant 0 : i32
    return %c0_i32, %c0_i32_0 : i32, i32
  }
  func.func @transform_4(%arg0: i32) -> (i32, i32) {
    %c0_i32 = arith.constant 0 : i32
    %c0_i32_0 = arith.constant 0 : i32
    %c0_i32_1 = arith.constant 0 : i32
    return %c0_i32, %c0_i32_0 : i32, i32
  }
  func.func @transform_5(%arg0: i32) -> (i32, i32) {
    %c0_i32 = arith.constant 0 : i32
    %c0_i32_0 = arith.constant 0 : i32
    %c0_i32_1 = arith.constant 0 : i32
    return %c0_i32, %c0_i32_0 : i32, i32
  }
  func.func @transform_6(%arg0: i32) -> (i32, i32) {
    %c0_i32 = arith.constant 0 : i32
    %c0_i32_0 = arith.constant 0 : i32
    %c0_i32_1 = arith.constant 0 : i32
    return %c0_i32, %c0_i32_0 : i32, i32
  }
  func.func @transform_7(%arg0: i32) -> (i32, i32) {
    %c0_i32 = arith.constant 0 : i32
    %c0_i32_0 = arith.constant 0 : i32
    return %arg0, %c0_i32 : i32, i32
  }
}

</mosaic_0001>

<llo_original>
// kernel: _expert_forward_impl.1
$region0: #{_expert_forward_impl.1}
  #allocation0 [shape = 'u32[]', space=smem, size = 0x4, offset = 0x4, fixed_abs, tag = 'smem constant byte address 0x4 - core index']
  #allocation1 [shape = 'u32[144,128]{1,0:T(1,128)}', space=vmem, size = 0x12000, scoped, tag = 'internal scratch']
  %s0 = inlined_call_operand.vmem [shape: bf16[16,128], index: 0, kind: input, shape index: {}]
  %s1 = inlined_call_operand.hbm [shape: bf16[128,128], index: 1, kind: input, shape index: {}]
  %s2 = inlined_call_operand.vmem [shape: f32[1,128], index: 2, kind: input, shape index: {}]
  %s3 = inlined_call_operand.hbm [shape: bf16[128,128], index: 3, kind: input, shape index: {}]
  %s4 = inlined_call_operand.vmem [shape: f32[1,128], index: 4, kind: input, shape index: {}]
  %s5 = inlined_call_operand.hbm [shape: bf16[128,128], index: 5, kind: input, shape index: {}]
  %s6 = inlined_call_operand.vmem [shape: f32[1,128], index: 6, kind: input, shape index: {}]
  %s7 = inlined_call_operand.vmem [shape: f32[16,128], index: 7, kind: output, shape index: {}]
  %s8 = sld [smem:[#allocation0]]
  $region50: #{_expert_forward_impl.1} parent=0
    _
  %s10 = ssub.s32 1, %s8
  %s11 = scalar_select 0, %s10, %s8
  $region1: #{_expert_forward_impl.1} parent=0
    #allocation2 [shape = 'u8[32768]{0}', space=vmem, size = 0x8000, scoped, tag = 'input window, operand 1, single buffered']
    #allocation3 [shape = 's32[1]{0}', space=sflag, size = 0x4, scoped, tag = 'scoped memory for _expert_forward_impl.1']
    #allocation4 [shape = 'u8[32768]{0}', space=vmem, size = 0x8000, scoped, tag = 'input window, operand 3, single buffered']
    #allocation5 [shape = 's32[1]{0}', space=sflag, size = 0x4, scoped, tag = 'scoped memory for _expert_forward_impl.1']
    #allocation6 [shape = 'u8[32768]{0}', space=vmem, size = 0x8000, scoped, tag = 'input window, operand 5, single buffered']
    %12 = vsyncpa [#allocation3], 0
    %13 = vsyncpa [#allocation5], 0
    // Predicated region
    $region2: #{_expert_forward_impl.1} parent=1 // pred_check
      _
    $region3: #{_expert_forward_impl.1} parent=1 // pred_check_branch
      %15 = sbr.rel (0) target = $region5
    $region4: #{_expert_forward_impl.1} parent=1 // pred_region
      _
    $region5: #{_expert_forward_impl.1} parent=1 // pred_fallthru
      _
    // Predicated region
    $region6: #{_expert_forward_impl.1} parent=1 // pred_check
      _
    $region7: #{_expert_forward_impl.1} parent=1 // pred_check_branch
      %17 = sbr.rel (0) target = $region9
    $region8: #{_expert_forward_impl.1} parent=1 // pred_region
      %s19 = ssub.s32 1024, 1024
      %20 = vsyncadd [#allocation3], %s19
      %s21 = sshll.u32 [#allocation2], 4
      %s22 = int_to_ptr.vmem [resolvable:$true] %s21
      %27 = dma.hbm_to_vmem [thread:$0]  %s1, 1024, %s22, [#allocation3], 64, 64, 4
    $region9: #{_expert_forward_impl.1} parent=1 // pred_fallthru
      _
    // Predicated region
    $region10: #{_expert_forward_impl.1} parent=1 // pred_check
      _
    $region11: #{_expert_forward_impl.1} parent=1 // pred_check_branch
      %29 = sbr.rel (0) target = $region13
    $region12: #{_expert_forward_impl.1} parent=1 // pred_region
      _
    $region13: #{_expert_forward_impl.1} parent=1 // pred_fallthru
      _
    // Predicated region
    $region14: #{_expert_forward_impl.1} parent=1 // pred_check
      _
    $region15: #{_expert_forward_impl.1} parent=1 // pred_check_branch
      %31 = sbr.rel (0) target = $region17
    $region16: #{_expert_forward_impl.1} parent=1 // pred_region
      %s33 = ssub.s32 1024, 1024
      %34 = vsyncadd [#allocation5], %s33
      %s35 = sshll.u32 [#allocation4], 4
      %s36 = int_to_ptr.vmem [resolvable:$true] %s35
      %41 = dma.hbm_to_vmem [thread:$0]  %s3, 1024, %s36, [#allocation5], 64, 64, 4
    $region17: #{_expert_forward_impl.1} parent=1 // pred_fallthru
      _
    // Predicated region
    $region18: #{_expert_forward_impl.1} parent=1 // pred_check
      _
    $region19: #{_expert_forward_impl.1} parent=1 // pred_check_branch
      %43 = sbr.rel (0) target = $region21
    $region20: #{_expert_forward_impl.1} parent=1 // pred_region
      _
    $region21: #{_expert_forward_impl.1} parent=1 // pred_fallthru
      _
    // Predicated region
    $region22: #{_expert_forward_impl.1} parent=1 // pred_check
      _
    $region23: #{_expert_forward_impl.1} parent=1 // pred_check_branch
      %45 = sbr.rel (0) target = $region25
    $region24: #{_expert_forward_impl.1} parent=1 // pred_region
      %s47 = ssub.s32 1024, 1024
      %48 = vsyncadd [#allocation5], %s47
      %s49 = sshll.u32 [#allocation6], 4
      %s50 = int_to_ptr.vmem [resolvable:$true] %s49
      %55 = dma.hbm_to_vmem [thread:$0]  %s5, 1024, %s50, [#allocation5], 64, 64, 4
    $region25: #{_expert_forward_impl.1} parent=1 // pred_fallthru
      _
    // Predicated region
    $region26: #{_expert_forward_impl.1} parent=1 // pred_check
      _
    $region27: #{_expert_forward_impl.1} parent=1 // pred_check_branch
      %57 = sbr.rel (0) target = $region29
    $region28: #{_expert_forward_impl.1} parent=1 // pred_region
      _
    $region29: #{_expert_forward_impl.1} parent=1 // pred_fallthru
      _
    // Predicated region
    $region30: #{_expert_forward_impl.1} parent=1 // pred_check
      _
    $region31: #{_expert_forward_impl.1} parent=1 // pred_check_branch
      %59 = sbr.rel (0) target = $region33
    $region32: #{_expert_forward_impl.1} parent=1 // pred_region
      %60 = dma.done [#allocation3], 1024
    $region33: #{_expert_forward_impl.1} parent=1 // pred_fallthru
      _
    // Predicated region
    $region34: #{_expert_forward_impl.1} parent=1 // pred_check
      _
    $region35: #{_expert_forward_impl.1} parent=1 // pred_check_branch
      %62 = sbr.rel (0) target = $region37
    $region36: #{_expert_forward_impl.1} parent=1 // pred_region
      %63 = dma.done [#allocation5], 1024
    $region37: #{_expert_forward_impl.1} parent=1 // pred_fallthru
      _
    // Predicated region
    $region38: #{_expert_forward_impl.1} parent=1 // pred_check
      _
    $region39: #{_expert_forward_impl.1} parent=1 // pred_check_branch
      %65 = sbr.rel (0) target = $region41
    $region40: #{_expert_forward_impl.1} parent=1 // pred_region
      %66 = dma.done [#allocation5], 1024
    $region41: #{_expert_forward_impl.1} parent=1 // pred_fallthru
      _
    %v68 = vld [vmem:[%s0] sm:$0xf]
    %v69 = vld [vmem:[%s0 + $0x4] sm:$0xf]
    %v70 = vld [vmem:[#allocation2] sm:$0xf]
    %v71 = vld [vmem:[#allocation2 + $0x4] sm:$0xf]
    %v72 = vld [vmem:[#allocation2 + $0x8] sm:$0xf]
    %v73 = vld [vmem:[#allocation2 + $0xc] sm:$0xf]
    %v74 = vld [vmem:[#allocation2 + $0x10] sm:$0xf]
    %v75 = vld [vmem:[#allocation2 + $0x14] sm:$0xf]
    %v76 = vld [vmem:[#allocation2 + $0x18] sm:$0xf]
    %v77 = vld [vmem:[#allocation2 + $0x1c] sm:$0xf]
    %v78 = vld [vmem:[#allocation2 + $0x20] sm:$0xf]
    %v79 = vld [vmem:[#allocation2 + $0x24] sm:$0xf]
    %v80 = vld [vmem:[#allocation2 + $0x28] sm:$0xf]
    %v81 = vld [vmem:[#allocation2 + $0x2c] sm:$0xf]
    %v82 = vld [vmem:[#allocation2 + $0x30] sm:$0xf]
    %v83 = vld [vmem:[#allocation2 + $0x34] sm:$0xf]
    %v84 = vld [vmem:[#allocation2 + $0x38] sm:$0xf]
    %v85 = vld [vmem:[#allocation2 + $0x3c] sm:$0xf]
    %v86 = vld [vmem:[%s2] sm:$0x1]
    %v88 = vlaneseq
    %v89 = vshrl.u32 %v88, 7
    %v90 = vsub.s32 0, %v89
    %v91 = vrot.slane %v86, %v90
    %v95 = vunpack.c.l.b16 %v68
    %v96 = vunpack.c.l.b16 %v69
    %v97 = vpack.c.b16 %v96, %v95
    %v115 = vunpack.c.l.b16 %v70
    %v116 = vunpack.c.l.b16 %v71
    %v117 = vunpack.c.l.b16 %v72
    %v118 = vunpack.c.l.b16 %v73
    %v119 = vunpack.c.l.b16 %v74
    %v120 = vunpack.c.l.b16 %v75
    %v121 = vunpack.c.l.b16 %v76
    %v122 = vunpack.c.l.b16 %v77
    %v123 = vunpack.c.l.b16 %v78
    %v124 = vunpack.c.l.b16 %v79
    %v125 = vunpack.c.l.b16 %v80
    %v126 = vunpack.c.l.b16 %v81
    %v127 = vunpack.c.l.b16 %v82
    %v128 = vunpack.c.l.b16 %v83
    %v129 = vunpack.c.l.b16 %v84
    %v130 = vunpack.c.l.b16 %v85
    %v131 = vpack.c.b16 %v116, %v115
    %v132 = vpack.c.b16 %v118, %v117
    %v133 = vpack.c.b16 %v120, %v119
    %v134 = vpack.c.b16 %v122, %v121
    %v135 = vpack.c.b16 %v124, %v123
    %v136 = vpack.c.b16 %v126, %v125
    %v137 = vpack.c.b16 %v128, %v127
    %v138 = vpack.c.b16 %v130, %v129
    %147 = vmatprep.subr.bf16.mxu0 0
    %148 = vmatpush1.bf16.msra.mxu0 %v138
    %149 = vmatprep.subr.bf16.mxu0 0
    %150 = vmatpush1.bf16.msra.mxu0 %v137
    %151 = vmatprep.subr.bf16.mxu0 0
    %152 = vmatpush1.bf16.msra.mxu0 %v136
    %153 = vmatprep.subr.bf16.mxu0 0
    %154 = vmatpush1.bf16.msra.mxu0 %v135
    %155 = vmatprep.subr.bf16.mxu0 0
    %156 = vmatpush1.bf16.msra.mxu0 %v134
    %157 = vmatprep.subr.bf16.mxu0 0
    %158 = vmatpush1.bf16.msra.mxu0 %v133
    %159 = vmatprep.subr.bf16.mxu0 0
    %160 = vmatpush1.bf16.msra.mxu0 %v132
    %161 = vmatprep.subr.bf16.mxu0 0
    %162 = vmatpush1.bf16.msra.mxu0 %v131
    %163 = vmatprep.subr.bf16.mxu0 0
    %164 = vmatpush2.bf16.msra.mxu0 0
    %165 = vmatprep.subr.bf16.mxu0 0
    %166 = vmatpush2.bf16.msra.mxu0 0
    %167 = vmatprep.subr.bf16.mxu0 0
    %168 = vmatpush2.bf16.msra.mxu0 0
    %169 = vmatprep.subr.bf16.mxu0 0
    %170 = vmatpush2.bf16.msra.mxu0 0
    %171 = vmatprep.subr.bf16.mxu0 0
    %172 = vmatpush2.bf16.msra.mxu0 0
    %173 = vmatprep.subr.bf16.mxu0 0
    %174 = vmatpush2.bf16.msra.mxu0 0
    %175 = vmatprep.subr.bf16.mxu0 0
    %176 = vmatpush2.bf16.msra.mxu0 0
    %177 = vmatprep.subr.bf16.mxu0 0
    %178 = vmatpush2.bf16.msra.mxu0 0
    %179 = vmatprep.mubr.bf16.mxu0 0
    %180 = vmatmul.mubr.bf16.gmra.mxu0 %v97
    %v181 = vpop.f32.mrf.mxu0
    %v182 = vadd.f32 %v91, %v181
    %v183 = vpop.f32.mrf.mxu0
    %v184 = vpop.f32.mrf.mxu0
    %v185 = vadd.f32 %v91, %v184
    %v186 = vpop.f32.mrf.mxu0
    %187 = vdwg.mxu0
    %v188 = vmax.f32 %v182, 0.0
    %v189 = vmax.f32 %v185, 0.0
    %v190 = vpack.c.bf16 %v189, %v188
    %v191 = vld [vmem:[#allocation4] sm:$0xf]
    %v192 = vld [vmem:[#allocation4 + $0x4] sm:$0xf]
    %v193 = vld [vmem:[#allocation4 + $0x8] sm:$0xf]
    %v194 = vld [vmem:[#allocation4 + $0xc] sm:$0xf]
    %v195 = vld [vmem:[#allocation4 + $0x10] sm:$0xf]
    %v196 = vld [vmem:[#allocation4 + $0x14] sm:$0xf]
    %v197 = vld [vmem:[#allocation4 + $0x18] sm:$0xf]
    %v198 = vld [vmem:[#allocation4 + $0x1c] sm:$0xf]
    %v199 = vld [vmem:[#allocation4 + $0x20] sm:$0xf]
    %v200 = vld [vmem:[#allocation4 + $0x24] sm:$0xf]
    %v201 = vld [vmem:[#allocation4 + $0x28] sm:$0xf]
    %v202 = vld [vmem:[#allocation4 + $0x2c] sm:$0xf]
    %v203 = vld [vmem:[#allocation4 + $0x30] sm:$0xf]
    %v204 = vld [vmem:[#allocation4 + $0x34] sm:$0xf]
    %v205 = vld [vmem:[#allocation4 + $0x38] sm:$0xf]
    %v206 = vld [vmem:[#allocation4 + $0x3c] sm:$0xf]
    %v207 = vld [vmem:[%s4] sm:$0x1]
    %v209 = vlaneseq
    %v210 = vshrl.u32 %v209, 7
    %v211 = vsub.s32 0, %v210
    %v212 = vrot.slane %v207, %v211
    %v230 = vunpack.c.l.b16 %v191
    %v231 = vunpack.c.l.b16 %v192
    %v232 = vunpack.c.l.b16 %v193
    %v233 = vunpack.c.l.b16 %v194
    %v234 = vunpack.c.l.b16 %v195
    %v235 = vunpack.c.l.b16 %v196
    %v236 = vunpack.c.l.b16 %v197
    %v237 = vunpack.c.l.b16 %v198
    %v238 = vunpack.c.l.b16 %v199
    %v239 = vunpack.c.l.b16 %v200
    %v240 = vunpack.c.l.b16 %v201
    %v241 = vunpack.c.l.b16 %v202
    %v242 = vunpack.c.l.b16 %v203
    %v243 = vunpack.c.l.b16 %v204
    %v244 = vunpack.c.l.b16 %v205
    %v245 = vunpack.c.l.b16 %v206
    %v246 = vpack.c.b16 %v231, %v230
    %v247 = vpack.c.b16 %v233, %v232
    %v248 = vpack.c.b16 %v235, %v234
    %v249 = vpack.c.b16 %v237, %v236
    %v250 = vpack.c.b16 %v239, %v238
    %v251 = vpack.c.b16 %v241, %v240
    %v252 = vpack.c.b16 %v243, %v242
    %v253 = vpack.c.b16 %v245, %v244
    %262 = vmatprep.subr.bf16.mxu0 0
    %263 = vmatpush1.bf16.msra.mxu0 %v253
    %264 = vmatprep.subr.bf16.mxu0 0
    %265 = vmatpush1.bf16.msra.mxu0 %v252
    %266 = vmatprep.subr.bf16.mxu0 0
    %267 = vmatpush1.bf16.msra.mxu0 %v251
    %268 = vmatprep.subr.bf16.mxu0 0
    %269 = vmatpush1.bf16.msra.mxu0 %v250
    %270 = vmatprep.subr.bf16.mxu0 0
    %271 = vmatpush1.bf16.msra.mxu0 %v249
    %272 = vmatprep.subr.bf16.mxu0 0
    %273 = vmatpush1.bf16.msra.mxu0 %v248
    %274 = vmatprep.subr.bf16.mxu0 0
    %275 = vmatpush1.bf16.msra.mxu0 %v247
    %276 = vmatprep.subr.bf16.mxu0 0
    %277 = vmatpush1.bf16.msra.mxu0 %v246
    %278 = vmatprep.subr.bf16.mxu0 0
    %279 = vmatpush2.bf16.msra.mxu0 0
    %280 = vmatprep.subr.bf16.mxu0 0
    %281 = vmatpush2.bf16.msra.mxu0 0
    %282 = vmatprep.subr.bf16.mxu0 0
    %283 = vmatpush2.bf16.msra.mxu0 0
    %284 = vmatprep.subr.bf16.mxu0 0
    %285 = vmatpush2.bf16.msra.mxu0 0
    %286 = vmatprep.subr.bf16.mxu0 0
    %287 = vmatpush2.bf16.msra.mxu0 0
    %288 = vmatprep.subr.bf16.mxu0 0
    %289 = vmatpush2.bf16.msra.mxu0 0
    %290 = vmatprep.subr.bf16.mxu0 0
    %291 = vmatpush2.bf16.msra.mxu0 0
    %292 = vmatprep.subr.bf16.mxu0 0
    %293 = vmatpush2.bf16.msra.mxu0 0
    %294 = vmatprep.mubr.bf16.mxu0 0
    %295 = vmatmul.mubr.bf16.gmra.mxu0 %v190
    %v296 = vpop.f32.mrf.mxu0
    %v297 = vadd.f32 %v212, %v296
    %v298 = vpop.f32.mrf.mxu0
    %v299 = vpop.f32.mrf.mxu0
    %v300 = vadd.f32 %v212, %v299
    %v301 = vpop.f32.mrf.mxu0
    %302 = vdwg.mxu0
    %v303 = vmax.f32 %v297, 0.0
    %v304 = vmax.f32 %v300, 0.0
    %v305 = vpack.c.bf16 %v304, %v303
    %v306 = vld [vmem:[#allocation6] sm:$0xf]
    %v307 = vld [vmem:[#allocation6 + $0x4] sm:$0xf]
    %v308 = vld [vmem:[#allocation6 + $0x8] sm:$0xf]
    %v309 = vld [vmem:[#allocation6 + $0xc] sm:$0xf]
    %v310 = vld [vmem:[#allocation6 + $0x10] sm:$0xf]
    %v311 = vld [vmem:[#allocation6 + $0x14] sm:$0xf]
    %v312 = vld [vmem:[#allocation6 + $0x18] sm:$0xf]
    %v313 = vld [vmem:[#allocation6 + $0x1c] sm:$0xf]
    %v314 = vld [vmem:[#allocation6 + $0x20] sm:$0xf]
    %v315 = vld [vmem:[#allocation6 + $0x24] sm:$0xf]
    %v316 = vld [vmem:[#allocation6 + $0x28] sm:$0xf]
    %v317 = vld [vmem:[#allocation6 + $0x2c] sm:$0xf]
    %v318 = vld [vmem:[#allocation6 + $0x30] sm:$0xf]
    %v319 = vld [vmem:[#allocation6 + $0x34] sm:$0xf]
    %v320 = vld [vmem:[#allocation6 + $0x38] sm:$0xf]
    %v321 = vld [vmem:[#allocation6 + $0x3c] sm:$0xf]
    %v322 = vld [vmem:[%s6] sm:$0x1]
    %v324 = vlaneseq
    %v325 = vshrl.u32 %v324, 7
    %v326 = vsub.s32 0, %v325
    %v327 = vrot.slane %v322, %v326
    %v345 = vunpack.c.l.b16 %v306
    %v346 = vunpack.c.l.b16 %v307
    %v347 = vunpack.c.l.b16 %v308
    %v348 = vunpack.c.l.b16 %v309
    %v349 = vunpack.c.l.b16 %v310
    %v350 = vunpack.c.l.b16 %v311
    %v351 = vunpack.c.l.b16 %v312
    %v352 = vunpack.c.l.b16 %v313
    %v353 = vunpack.c.l.b16 %v314
    %v354 = vunpack.c.l.b16 %v315
    %v355 = vunpack.c.l.b16 %v316
    %v356 = vunpack.c.l.b16 %v317
    %v357 = vunpack.c.l.b16 %v318
    %v358 = vunpack.c.l.b16 %v319
    %v359 = vunpack.c.l.b16 %v320
    %v360 = vunpack.c.l.b16 %v321
    %v361 = vpack.c.b16 %v346, %v345
    %v362 = vpack.c.b16 %v348, %v347
    %v363 = vpack.c.b16 %v350, %v349
    %v364 = vpack.c.b16 %v352, %v351
    %v365 = vpack.c.b16 %v354, %v353
    %v366 = vpack.c.b16 %v356, %v355
    %v367 = vpack.c.b16 %v358, %v357
    %v368 = vpack.c.b16 %v360, %v359
    %377 = vmatprep.subr.bf16.mxu0 0
    %378 = vmatpush1.bf16.msra.mxu0 %v368
    %379 = vmatprep.subr.bf16.mxu0 0
    %380 = vmatpush1.bf16.msra.mxu0 %v367
    %381 = vmatprep.subr.bf16.mxu0 0
    %382 = vmatpush1.bf16.msra.mxu0 %v366
    %383 = vmatprep.subr.bf16.mxu0 0
    %384 = vmatpush1.bf16.msra.mxu0 %v365
    %385 = vmatprep.subr.bf16.mxu0 0
    %386 = vmatpush1.bf16.msra.mxu0 %v364
    %387 = vmatprep.subr.bf16.mxu0 0
    %388 = vmatpush1.bf16.msra.mxu0 %v363
    %389 = vmatprep.subr.bf16.mxu0 0
    %390 = vmatpush1.bf16.msra.mxu0 %v362
    %391 = vmatprep.subr.bf16.mxu0 0
    %392 = vmatpush1.bf16.msra.mxu0 %v361
    %393 = vmatprep.subr.bf16.mxu0 0
    %394 = vmatpush2.bf16.msra.mxu0 0
    %395 = vmatprep.subr.bf16.mxu0 0
    %396 = vmatpush2.bf16.msra.mxu0 0
    %397 = vmatprep.subr.bf16.mxu0 0
    %398 = vmatpush2.bf16.msra.mxu0 0
    %399 = vmatprep.subr.bf16.mxu0 0
    %400 = vmatpush2.bf16.msra.mxu0 0
    %401 = vmatprep.subr.bf16.mxu0 0
    %402 = vmatpush2.bf16.msra.mxu0 0
    %403 = vmatprep.subr.bf16.mxu0 0
    %404 = vmatpush2.bf16.msra.mxu0 0
    %405 = vmatprep.subr.bf16.mxu0 0
    %406 = vmatpush2.bf16.msra.mxu0 0
    %407 = vmatprep.subr.bf16.mxu0 0
    %408 = vmatpush2.bf16.msra.mxu0 0
    %409 = vmatprep.mubr.bf16.mxu0 0
    %410 = vmatmul.mubr.bf16.gmra.mxu0 %v305
    %v411 = vpop.f32.mrf.mxu0
    %v412 = vadd.f32 %v327, %v411
    %v413 = vpop.f32.mrf.mxu0
    %v414 = vpop.f32.mrf.mxu0
    %v415 = vadd.f32 %v327, %v414
    %v416 = vpop.f32.mrf.mxu0
    %417 = vdwg.mxu0
    %418 = vst [vmem:[%s7] sm:$0xff] %v412
    %419 = vst [vmem:[%s7 + $0x8] sm:$0xff] %v415
    // Predicated region
    $region42: #{_expert_forward_impl.1} parent=1 // pred_check
      _
    $region43: #{_expert_forward_impl.1} parent=1 // pred_check_branch
      %421 = sbr.rel (0) target = $region45
    $region44: #{_expert_forward_impl.1} parent=1 // pred_region
      _
    $region45: #{_expert_forward_impl.1} parent=1 // pred_fallthru
      _
    // Predicated region
    $region46: #{_expert_forward_impl.1} parent=1 // pred_check
      _
    $region47: #{_expert_forward_impl.1} parent=1 // pred_check_branch
      %423 = sbr.rel (0) target = $region49
    $region48: #{_expert_forward_impl.1} parent=1 // pred_region
      _
    $region49: #{_expert_forward_impl.1} parent=1 // pred_fallthru
      _
    %424 = vsyncpa [#allocation3], 1
    %425 = vsyncpa [#allocation5], 1

</llo_original>
